<compile_context>
chip_gen: v7x
topology: tpu7x:2x2x1
jax: 0.10.0
libtpu: 0.0.40
codegen_flags: <defaults>
</compile_context>

<pallas_src>
import functools

import jax
import jax.numpy as jnp
from jax import lax
from jax.experimental import pallas as pl
from jax.experimental.pallas import tpu as pltpu

_LANE = 128


# ----------------------------------------------------------------------------
# VMEM budgeting (padded footprints, generation aware).
# ----------------------------------------------------------------------------
def _sublane(dtype) -> int:
    # 8 sublanes of 32-bit; sub-32-bit dtypes pack along sublanes.
    return max(8, 32 // max(jnp.dtype(dtype).itemsize, 1))


def _padded_tile_bytes(rows: int, cols: int, dtype) -> int:
    """VMEM footprint of a (rows, cols) tile after (sublane, lane) padding."""
    dt = jnp.dtype(dtype)
    pr = -(-rows // _sublane(dt)) * _sublane(dt)
    pc = -(-cols // _LANE) * _LANE
    return pr * pc * dt.itemsize


def _vmem_budget():
    """(scoped vmem limit, target native-dtype block bytes) for this chip."""
    try:
        cap = int(getattr(pltpu.get_tpu_info(), "vmem_capacity_bytes",
                          64 * 1024 * 1024))
    except Exception:  # no TPU info available -> assume the smallest (v7x)
        cap = 64 * 1024 * 1024
    if cap >= 100 * 1024 * 1024:                 # v5e / v6e: 128 MiB physical
        return 96 * 1024 * 1024, 12 * 1024 * 1024
    return 48 * 1024 * 1024, 6 * 1024 * 1024     # v7x: 64 MiB physical


def _pick_batch_tile(b: int, per_image_bytes: int, max_block_bytes: int,
                     min_blocks: int) -> int:
    """Largest divisor of b that fits the budget, preferring >= min_blocks steps."""
    limit = max(1, max_block_bytes // max(per_image_bytes, 1))
    divisors = [d for d in range(1, b + 1) if b % d == 0]
    fits = [d for d in divisors if d <= limit]
    preferred = [d for d in fits if b // d >= min_blocks]
    if preferred:
        return max(preferred)
    return max(fits) if fits else 1


def _pick_h_tile(h: int, w: int, dtype, max_block_bytes: int) -> int:
    """Sublane-aligned divisor of H for streaming a too-large single image."""
    cands = [d for d in range(8, h, 8) if h % d == 0]
    fits = [d for d in cands if _padded_tile_bytes(d, w, dtype) <= max_block_bytes]
    if fits:
        return max(fits)
    if cands:
        return min(cands)
    # TODO(synk): H has no multiple-of-8 proper divisor; fall back to full-H
    # blocks (may exceed the VMEM budget for pathological single-image shapes).
    return h


# ----------------------------------------------------------------------------
# Kernel.
# ----------------------------------------------------------------------------
def _tv_loss_kernel(x_ref, halo_ref, o_ref, *, tb, th, w, use_lane_roll,
                    inv_count_h, inv_count_w):
    f32 = jnp.float32

    # Vertical (H) neighbour differences inside the block: subtract in the
    # native dtype, cast only the difference to f32 (no full-block f32 copy).
    dh = (x_ref[:, 1:, :] - x_ref[:, :-1, :]).astype(f32)
    h_tv = jnp.sum(dh * dh)

    # Seam row between this H tile and the next (first row of the halo block).
    # The last H tile has no successor, so its seam term is masked out.
    halo = halo_ref[...]
    seam = (halo[:, 0, :] - x_ref[:, th - 1, :]).astype(f32)
    not_last = (pl.program_id(1) + 1 < pl.num_programs(1)).astype(f32)
    h_tv = h_tv + not_last * jnp.sum(seam * seam)

    # Horizontal (W) neighbour differences.
    if use_lane_roll:
        # Lane-aligned W: shift columns with an XLU rotate + iota edge mask
        # instead of a tile-misaligned slice (avoids relayout copies on v7x).
        xf = x_ref[...].reshape(tb * th, w)
        dw = (pltpu.roll(xf, w - 1, axis=1) - xf).astype(f32)   # col j+1 at j
        col = lax.broadcasted_iota(jnp.int32, (tb * th, w), 1)
        w_tv = jnp.sum(jnp.where(col < w - 1, dw * dw, 0.0))
    else:
        dw = (x_ref[:, :, 1:] - x_ref[:, :, :-1]).astype(f32)
        w_tv = jnp.sum(dw * dw)

    part = h_tv * inv_count_h + w_tv * inv_count_w
    # Lane-dense, (8,128)-aligned per-block partial (unmasked stores).
    o_ref[...] = jnp.full(o_ref.shape, part, dtype=f32)


# ----------------------------------------------------------------------------
# Wrapper.
# ----------------------------------------------------------------------------
def tv_loss(x: jax.Array, *, max_block_bytes=None) -> jax.Array:
    """Total-variation loss, identical semantics to the PyTorch TVLoss.forward."""
    N, C, H, W = x.shape
    B = N * C
    # PyTorch: count_h = C*(H-1)*W ; count_w = C*H*(W-1).
    # (H == 1 or W == 1 gives inf/nan in PyTorch too; not guarded here.)
    count_h = float(C * (H - 1) * W)
    count_w = float(C * H * (W - 1))

    vmem_limit, block_budget = _vmem_budget()
    if max_block_bytes is not None:
        block_budget = max_block_bytes

    xr = x.reshape(B, H, W)            # native dtype straight through the DMA
    per_image = _padded_tile_bytes(H, W, x.dtype)

    if per_image <= block_budget:
        th = H
        tb = _pick_batch_tile(B, per_image, block_budget, min_blocks=min(B, 4))
    else:
        # Single image exceeds the budget: stream sublane-aligned H tiles; the
        # seam rows are supplied by the halo input and counted exactly once.
        tb = 1
        th = _pick_h_tile(H, W, x.dtype, block_budget)

    num_b = B // tb
    num_h = H // th

    halo_rows = min(8, H)                          # sublane-aligned (or full H)
    halo_step = th // halo_rows if th % halo_rows == 0 else 0

    def halo_index_map(b, h):
        # First rows of the *next* H tile; wraps to tile 0 on the last H tile,
        # where the kernel masks the seam contribution anyway.
        return (b, ((h + 1) % num_h) * halo_step, 0)

    use_lane_roll = (W % _LANE == 0) and (tb == 1 or th % 8 == 0)

    kernel = functools.partial(
        _tv_loss_kernel,
        tb=tb, th=th, w=W, use_lane_roll=use_lane_roll,
        inv_count_h=1.0 / count_h, inv_count_w=1.0 / count_w,
    )

    partials = pl.pallas_call(
        kernel,
        out_shape=jax.ShapeDtypeStruct((num_b, num_h, 8, 128), jnp.float32),
        grid_spec=pltpu.PrefetchScalarGridSpec(
            num_scalar_prefetch=0,
            grid=(num_b, num_h),
            in_specs=[
                pl.BlockSpec((tb, th, W), lambda b, h: (b, h, 0)),
                pl.BlockSpec((tb, halo_rows, W), halo_index_map),
            ],
            out_specs=pl.BlockSpec((1, 1, 8, 128), lambda b, h: (b, h, 0, 0)),
        ),
        compiler_params=pltpu.CompilerParams(
            dimension_semantics=("parallel", "parallel"),
            vmem_limit_bytes=vmem_limit,
        ),
    )(xr, xr)

    # Tiny cross-block reduction (one scalar per block) finishes in plain JAX.
    return jnp.sum(partials[:, :, 0, 0])


def tv_loss_ref(x: jax.Array) -> jax.Array:
    """Pure-JAX reference mirroring the PyTorch forward."""
    _, C, H, W = x.shape
    count_h = C * (H - 1) * W
    count_w = C * H * (W - 1)
    h_tv = jnp.sum((x[:, :, 1:, :] - x[:, :, : H - 1, :]) ** 2)
    w_tv = jnp.sum((x[:, :, :, 1:] - x[:, :, :, : W - 1]) ** 2)
    return h_tv / count_h + w_tv / count_w


if __name__ == "__main__":
    key = jax.random.PRNGKey(0)
    k1, k2 = jax.random.split(key)

    # Small NCHW input consistent with the module.
    x = jax.random.normal(k1, (2, 4, 16, 16), dtype=jnp.float32)
    out = jax.block_until_ready(tv_loss(x))
    ref = jax.block_until_ready(tv_loss_ref(x))
    assert jnp.allclose(out, ref, rtol=1e-5, atol=1e-5), (out, ref)

    # Force the H-tiled (halo seam) path on the same input.
    out_tiled = jax.block_until_ready(tv_loss(x, max_block_bytes=4096))
    assert jnp.allclose(out_tiled, ref, rtol=1e-5, atol=1e-5), (out_tiled, ref)

    # Lane-aligned width exercises the pltpu.roll path.
    x2 = jax.random.normal(k2, (1, 2, 16, 128), dtype=jnp.float32)
    out2 = jax.block_until_ready(tv_loss(x2))
    ref2 = jax.block_until_ready(tv_loss_ref(x2))
    assert jnp.allclose(out2, ref2, rtol=1e-5, atol=1e-5), (out2, ref2)

    print("KERNEL_OK")
</pallas_src>

<mosaic_0001>
module attributes {stable_mosaic.version = 11 : i64} {
  func.func @_tv_loss_kernel(%arg0: i32, %arg1: i32, %arg2: memref<2x16x16xf32, #tpu.memory_space<vmem>>, %arg3: memref<2x8x16xf32, #tpu.memory_space<vmem>>, %arg4: memref<1x1x8x128xf32, #tpu.memory_space<vmem>>) attributes {dimension_semantics = [#tpu.dimension_semantics<parallel>, #tpu.dimension_semantics<parallel>], iteration_bounds = array<i64: 4, 1>, scalar_prefetch = 0 : i64, scratch_operands = 0 : i64, tpu.core_type = #tpu.core_type<tc>, window_params = [{transform_indices = @transform_0, window_bounds = array<i64: 2, 16, 16>}, {transform_indices = @transform_1, window_bounds = array<i64: 2, 8, 16>}, {transform_indices = @transform_2, window_bounds = array<i64: 1, 1, 8, 128>}]} {
    %c0 = arith.constant 0 : index
    %c1 = arith.constant 1 : index
    %c0_0 = arith.constant 0 : index
    %0 = vector.load %arg2[%c0, %c1, %c0_0] : memref<2x16x16xf32, #tpu.memory_space<vmem>>, vector<2x15x16xf32>
    %c0_1 = arith.constant 0 : index
    %c0_2 = arith.constant 0 : index
    %c0_3 = arith.constant 0 : index
    %1 = vector.load %arg2[%c0_1, %c0_2, %c0_3] : memref<2x16x16xf32, #tpu.memory_space<vmem>>, vector<2x15x16xf32>
    %2 = arith.subf %0, %1 : vector<2x15x16xf32>
    %3 = arith.mulf %2, %2 : vector<2x15x16xf32>
    %4 = vector.shape_cast %3 : vector<2x15x16xf32> to vector<1x2x15x16xf32>
    %cst = arith.constant dense<0.000000e+00> : vector<1xf32>
    %5 = vector.multi_reduction <add>, %4, %cst [1, 2, 3] : vector<1x2x15x16xf32> to vector<1xf32>
    %6 = vector.shape_cast %5 : vector<1xf32> to vector<1x1x1x1xf32>
    %7 = vector.extract %6[0, 0, 0, 0] : f32 from vector<1x1x1x1xf32>
    %c0_4 = arith.constant 0 : index
    %c0_5 = arith.constant 0 : index
    %c0_6 = arith.constant 0 : index
    %8 = vector.load %arg3[%c0_4, %c0_5, %c0_6] : memref<2x8x16xf32, #tpu.memory_space<vmem>>, vector<2x8x16xf32>
    %9 = vector.extract_strided_slice %8 {offsets = [0, 0, 0], sizes = [2, 1, 16], strides = [1, 1, 1]} : vector<2x8x16xf32> to vector<2x1x16xf32>
    %10 = vector.shape_cast %9 : vector<2x1x16xf32> to vector<2x16xf32>
    %c0_7 = arith.constant 0 : index
    %c15 = arith.constant 15 : index
    %c0_8 = arith.constant 0 : index
    %11 = vector.load %arg2[%c0_7, %c15, %c0_8] : memref<2x16x16xf32, #tpu.memory_space<vmem>>, vector<2x1x16xf32>
    %12 = vector.shape_cast %11 : vector<2x1x16xf32> to vector<2x16xf32>
    %13 = arith.subf %10, %12 : vector<2x16xf32>
    %c1_i32 = arith.constant 1 : i32
    %14 = arith.addi %arg1, %c1_i32 : i32
    %c1_i32_9 = arith.constant 1 : i32
    %15 = arith.cmpi slt, %14, %c1_i32_9 : i32
    %16 = arith.extui %15 : i1 to i32
    %17 = arith.sitofp %16 : i32 to f32
    %18 = arith.mulf %13, %13 : vector<2x16xf32>
    %19 = vector.shape_cast %18 : vector<2x16xf32> to vector<1x2x16xf32>
    %cst_10 = arith.constant dense<0.000000e+00> : vector<1xf32>
    %20 = vector.multi_reduction <add>, %19, %cst_10 [1, 2] : vector<1x2x16xf32> to vector<1xf32>
    %21 = vector.shape_cast %20 : vector<1xf32> to vector<1x1x1xf32>
    %22 = vector.extract %21[0, 0, 0] : f32 from vector<1x1x1xf32>
    %23 = arith.mulf %17, %22 : f32
    %24 = arith.addf %7, %23 : f32
    %c0_11 = arith.constant 0 : index
    %c0_12 = arith.constant 0 : index
    %c1_13 = arith.constant 1 : index
    %25 = vector.load %arg2[%c0_11, %c0_12, %c1_13] : memref<2x16x16xf32, #tpu.memory_space<vmem>>, vector<2x16x15xf32>
    %c0_14 = arith.constant 0 : index
    %c0_15 = arith.constant 0 : index
    %c0_16 = arith.constant 0 : index
    %26 = vector.load %arg2[%c0_14, %c0_15, %c0_16] : memref<2x16x16xf32, #tpu.memory_space<vmem>>, vector<2x16x15xf32>
    %27 = arith.subf %25, %26 : vector<2x16x15xf32>
    %28 = arith.mulf %27, %27 : vector<2x16x15xf32>
    %29 = vector.shape_cast %28 : vector<2x16x15xf32> to vector<1x2x16x15xf32>
    %cst_17 = arith.constant dense<0.000000e+00> : vector<1xf32>
    %30 = vector.multi_reduction <add>, %29, %cst_17 [1, 2, 3] : vector<1x2x16x15xf32> to vector<1xf32>
    %31 = vector.shape_cast %30 : vector<1xf32> to vector<1x1x1x1xf32>
    %32 = vector.extract %31[0, 0, 0, 0] : f32 from vector<1x1x1x1xf32>
    %cst_18 = arith.constant 0.00104166672 : f32
    %33 = arith.mulf %24, %cst_18 : f32
    %cst_19 = arith.constant 0.00104166672 : f32
    %34 = arith.mulf %32, %cst_19 : f32
    %35 = arith.addf %33, %34 : f32
    %36 = vector.broadcast %35 : f32 to vector<1x1x8x128xf32>
    %c0_20 = arith.constant 0 : index
    %c0_21 = arith.constant 0 : index
    %c0_22 = arith.constant 0 : index
    %c0_23 = arith.constant 0 : index
    %37 = vector.load %arg4[%c0_20, %c0_21, %c0_22, %c0_23] : memref<1x1x8x128xf32, #tpu.memory_space<vmem>>, vector<1x1x8x128xf32>
    tpu.vector_store %arg4[%c0_20, %c0_21, %c0_22, %c0_23], %36 {strides = array<i32>} : memref<1x1x8x128xf32, #tpu.memory_space<vmem>>, vector<1x1x8x128xf32>,
    return
  }
  func.func @transform_0(%arg0: i32, %arg1: i32) -> (i32, i32, i32) {
    %c0_i32 = arith.constant 0 : i32
    %c0_i32_0 = arith.constant 0 : i32
    return %arg0, %arg1, %c0_i32 : i32, i32, i32
  }
  func.func @transform_1(%arg0: i32, %arg1: i32) -> (i32, i32, i32) {
    %c1_i32 = arith.constant 1 : i32
    %0 = arith.addi %arg1, %c1_i32 : i32
    %c1_i32_0 = arith.constant 1 : i32
    %c0_i32 = arith.constant 0 : i32
    %1 = arith.cmpi eq, %c1_i32_0, %c0_i32 : i32
    %c1_i32_1 = arith.constant 1 : i32
    %2 = arith.select %1, %c1_i32_1, %c1_i32_0 : i32
    %3 = arith.remsi %0, %2 : i32
    %c0_i32_2 = arith.constant 0 : i32
    %4 = arith.cmpi ne, %3, %c0_i32_2 : i32
    %c0_i32_3 = arith.constant 0 : i32
    %5 = arith.cmpi slt, %3, %c0_i32_3 : i32
    %c0_i32_4 = arith.constant 0 : i32
    %6 = arith.cmpi slt, %2, %c0_i32_4 : i32
    %7 = arith.xori %5, %6 : i1
    %8 = arith.andi %7, %4 : i1
    %9 = arith.addi %3, %2 : i32
    %10 = arith.select %8, %9, %3 : i32
    %c2_i32 = arith.constant 2 : i32
    %11 = arith.muli %10, %c2_i32 : i32
    %c0_i32_5 = arith.constant 0 : i32
    %c0_i32_6 = arith.constant 0 : i32
    return %arg0, %11, %c0_i32_5 : i32, i32, i32
  }
  func.func @transform_2(%arg0: i32, %arg1: i32) -> (i32, i32, i32, i32) {
    %c0_i32 = arith.constant 0 : i32
    %c0_i32_0 = arith.constant 0 : i32
    %c0_i32_1 = arith.constant 0 : i32
    return %arg0, %arg1, %c0_i32, %c0_i32_0 : i32, i32, i32, i32
  }
}

</mosaic_0001>

<llo_original>
// kernel: tpu_custom_call.1
$region0: #{tpu_custom_call.1}
  #allocation0 [shape = 'u32[]', space=smem, size = 0x4, offset = 0x4, fixed_abs, tag = 'smem constant byte address 0x4 - core index']
  #allocation1 [shape = 'u32[144,128]{1,0:T(1,128)}', space=vmem, size = 0x12000, scoped, tag = 'internal scratch']
  %s0 = inlined_call_operand.hbm [shape: f32[8,16,16], index: 0, kind: input, shape index: {}]
  %s1 = inlined_call_operand.hbm [shape: f32[8,16,16], index: 1, kind: input, shape index: {}]
  %s2 = inlined_call_operand.hbm [shape: f32[4,1,8,128], index: 2, kind: output, shape index: {}]
  %s3 = sld [smem:[#allocation0]]
  $region49: #{tpu_custom_call.1} parent=0
    _
  %s5 = ssub.s32 1, %s3
  %s6 = scalar_select 0, %s5, %s3
  $region1: #{tpu_custom_call.1} parent=0
    #allocation2 [shape = 'u8[32768]{0}', space=vmem, size = 0x8000, scoped, tag = 'input window, operand 0']
    #allocation3 [shape = 's32[2]{0}', space=sflag, size = 0x8, scoped, tag = 'scoped memory for tpu_custom_call.1']
    #allocation4 [shape = 's32[2]{0}', space=sflag, size = 0x8, scoped, tag = 'scoped memory for tpu_custom_call.1']
    #allocation5 [shape = 'u8[16384]{0}', space=vmem, size = 0x4000, scoped, tag = 'input window, operand 1']
    #allocation6 [shape = 's32[2]{0}', space=sflag, size = 0x8, scoped, tag = 'scoped memory for tpu_custom_call.1']
    #allocation7 [shape = 'u8[8192]{0}', space=vmem, size = 0x2000, scoped, tag = 'output window, operand 0']
    %7 = vsyncpa [#allocation3], 0
    %s8 = scalar_lea.sflag [#allocation3], 1
    %9 = vsyncpa %s8, 0
    %10 = vsyncpa [#allocation6], 0
    %s11 = scalar_lea.sflag [#allocation6], 1
    %12 = vsyncpa %s11, 0
    %13 = vsyncpa [#allocation4], 0
    %s14 = scalar_lea.sflag [#allocation4], 1
    %15 = vsyncpa %s14, 0
    loop: start=0, step=1, limit=6
    $region2: #{tpu_custom_call.1} parent=1 // loop_pre_header
      _
    $region3: #{tpu_custom_call.1} parent=1 // loop_header
      %s17 = sphi 0, %s21
      %p18 = scmp.ge.s32.totalorder %s17, 6
      %s24 = sphi 0, %s36
      %s25 = sphi 0, %s32
      %s26 = sphi 0, %s24
      %s27 = sphi 0, %s25
      %s28 = sphi 0, %s26
      %s29 = sphi 0, %s27
      %s41 = sphi 0, %s43
      %s44 = sphi 0, %s41
      %s45 = sphi 0, %s44
      %s61 = sphi 0, %s45
      %s67 = sphi 0, %s69
      %s70 = sphi 0, %s67
      %s71 = sphi 0, %s70
      %s87 = sphi 0, %s71
      %s95 = sphi 0, %s97
      %s98 = sphi 0, %s95
      %s99 = sphi 0, %s98
      %s115 = sphi 0, %s99
    $region4: #{tpu_custom_call.1} parent=1 // loop_header_branch
      %20 = sbr.rel (%p18) target = $region8
    $region5: #{tpu_custom_call.1} parent=1 // loop_body
      %s22 = ssub.s32 %s17, 1
      %s23 = ssub.s32 %s17, 2
      %s30 = sadd.s32 1, %s25
      %p31 = scmp.ge.s32.totalorder %s30, 1
      %s32 = scalar_select %p31, 0, %s30
      %s33 = sadd.s32 1, %s24
      %s34 = scalar_select %p31, %s33, %s24
      %p35 = scmp.ge.s32.totalorder %s34, 4
      %s36 = scalar_select %p35, 0, %s34
      %s37 = ssub.s32 %s24, %s36
      %s38 = ssub.s32 %s25, %s32
      %s39 = sor.u32 %s37, %s38
      %p40 = scmp.eq.s32.totalorder %s39, 0
      %s42 = sadd.s32 %s41, 1
      %s43 = scalar_select %p40, %s41, %s42
      %p46 = pneg %p40
      %p47 = scmp.eq.s32.totalorder %s17, 3
      %p48 = por %p46, %p47
      %p49 = scmp.ne.s32.totalorder %s41, %s44
      %p50 = scmp.eq.s32.totalorder %s17, 0
      %p51 = por %p49, %p50
      %p52 = scmp.ne.s32.totalorder %s41, %s44
      %p53 = scmp.eq.s32.totalorder %s22, 3
      %p54 = por %p52, %p53
      %p55 = scmp.ne.s32.totalorder %s44, %s45
      %p56 = scmp.eq.s32.totalorder %s22, 0
      %p57 = por %p55, %p56
      %p58 = scmp.ne.s32.totalorder %s44, %s45
      %p59 = scmp.eq.s32.totalorder %s23, 3
      %p60 = por %p58, %p59
      %p62 = scmp.ne.s32.totalorder %s45, %s61
      %p63 = scmp.eq.s32.totalorder %s23, 0
      %p64 = por %p62, %p63
      %s65 = ssub.s32 %s24, %s36
      %p66 = scmp.eq.s32.totalorder %s65, 0
      %s68 = sadd.s32 %s67, 1
      %s69 = scalar_select %p66, %s67, %s68
      %p72 = pneg %p66
      %p73 = scmp.eq.s32.totalorder %s17, 3
      %p74 = por %p72, %p73
      %p75 = scmp.ne.s32.totalorder %s67, %s70
      %p76 = scmp.eq.s32.totalorder %s17, 0
      %p77 = por %p75, %p76
      %p78 = scmp.ne.s32.totalorder %s67, %s70
      %p79 = scmp.eq.s32.totalorder %s22, 3
      %p80 = por %p78, %p79
      %p81 = scmp.ne.s32.totalorder %s70, %s71
      %p82 = scmp.eq.s32.totalorder %s22, 0
      %p83 = por %p81, %p82
      %p84 = scmp.ne.s32.totalorder %s70, %s71
      %p85 = scmp.eq.s32.totalorder %s23, 3
      %p86 = por %p84, %p85
      %p88 = scmp.ne.s32.totalorder %s71, %s87
      %p89 = scmp.eq.s32.totalorder %s23, 0
      %p90 = por %p88, %p89
      %s91 = ssub.s32 %s24, %s36
      %s92 = ssub.s32 %s25, %s32
      %s93 = sor.u32 %s91, %s92
      %p94 = scmp.eq.s32.totalorder %s93, 0
      %s96 = sadd.s32 %s95, 1
      %s97 = scalar_select %p94, %s95, %s96
      %p100 = pneg %p94
      %p101 = scmp.eq.s32.totalorder %s17, 3
      %p102 = por %p100, %p101
      %p103 = scmp.ne.s32.totalorder %s95, %s98
      %p104 = scmp.eq.s32.totalorder %s17, 0
      %p105 = por %p103, %p104
      %p106 = scmp.ne.s32.totalorder %s95, %s98
      %p107 = scmp.eq.s32.totalorder %s22, 3
      %p108 = por %p106, %p107
      %p109 = scmp.ne.s32.totalorder %s98, %s99
      %p110 = scmp.eq.s32.totalorder %s22, 0
      %p111 = por %p109, %p110
      %p112 = scmp.ne.s32.totalorder %s98, %s99
      %p113 = scmp.eq.s32.totalorder %s23, 3
      %p114 = por %p112, %p113
      %p116 = scmp.ne.s32.totalorder %s99, %s115
      %p117 = scmp.eq.s32.totalorder %s23, 0
      %p118 = por %p116, %p117
      %p119 = scmp.le.s32.totalorder 1, %s17
      %p120 = scmp.lt.s32.totalorder %s17, 5
      %p121 = pnand %p119, %p120
      %p122 = pneg %p121
      // Predicated region
      $region9: #{tpu_custom_call.1} parent=5 // pred_check
        _
      $region10: #{tpu_custom_call.1} parent=5 // pred_check_branch
        %124 = sbr.rel (%p121) target = $region12
      $region11: #{tpu_custom_call.1} parent=5 // pred_region
        %s125 = ssub.s32 %s17, 1
      $region12: #{tpu_custom_call.1} parent=5 // pred_fallthru
        _
      %p126 = scmp.lt.s32.totalorder %s17, 4
      // Predicated region
      $region13: #{tpu_custom_call.1} parent=5 // pred_check
        %p127 = pneg %p126
      $region14: #{tpu_custom_call.1} parent=5 // pred_check_branch
        %129 = sbr.rel (%p127) target = $region16
      $region15: #{tpu_custom_call.1} parent=5 // pred_region
        // Predicated region
        $region17: #{tpu_custom_call.1} parent=15 // pred_check
          %p130 = pneg %p51
        $region18: #{tpu_custom_call.1} parent=15 // pred_check_branch
          %132 = sbr.rel (%p130) target = $region20
        $region19: #{tpu_custom_call.1} parent=15 // pred_region
          %s133 = sand.u32 %s41, 1
          %s134 = scalar_lea.sflag [#allocation3], %s133
          %s135 = sand.u32 %s41, 1
          %s136 = smul.addr %s135, 32
          %s137 = scalar_lea.vmem [#allocation2], %s136
          %s138 = smul.u32 2, %s24
          %s139 = smul.u32 2, %s25
          %s141 = ssub.s32 512, 512
          %142 = vsyncadd %s134, %s141
          %s143 = smul.addr %s138, 2
          %s144 = sadd.s32 %s139, %s143
          %s145 = smul.addr %s144, 128
          %s146 = scalar_lea.hbm %s0, %s145
          %s147 = sshll.u32 %s137, 4
          %s148 = int_to_ptr.vmem [resolvable:$true] %s147
          %153 = dma.hbm_to_vmem [thread:$0]  %s146, 512, %s148, %s134, 128, 128, 8
        $region20: #{tpu_custom_call.1} parent=15 // pred_fallthru
          _
        // Predicated region
        $region21: #{tpu_custom_call.1} parent=15 // pred_check
          %p154 = pneg %p77
        $region22: #{tpu_custom_call.1} parent=15 // pred_check_branch
          %156 = sbr.rel (%p154) target = $region24
        $region23: #{tpu_custom_call.1} parent=15 // pred_region
          %s157 = sand.u32 %s67, 1
          %s158 = scalar_lea.sflag [#allocation6], %s157
          %s159 = sand.u32 %s67, 1
          %s160 = smul.addr %s159, 16
          %s161 = scalar_lea.vmem [#allocation5], %s160
          %s162 = smul.u32 2, %s24
          %s164 = ssub.s32 256, 256
          %165 = vsyncadd %s158, %s164
          %s166 = smul.addr %s162, 2
          %s167 = smul.addr %s166, 128
          %s168 = scalar_lea.hbm %s1, %s167
          %s169 = sshll.u32 %s161, 4
          %s170 = int_to_ptr.vmem [resolvable:$true] %s169
          %175 = dma.hbm_to_vmem [thread:$0]  %s168, 256, %s170, %s158, 256, 128, 8
        $region24: #{tpu_custom_call.1} parent=15 // pred_fallthru
          _
      $region16: #{tpu_custom_call.1} parent=5 // pred_fallthru
        _
      %p176 = scmp.le.s32.totalorder 1, %s17
      %p177 = scmp.lt.s32.totalorder %s17, 5
      %p178 = pnand %p176, %p177
      %p179 = pneg %p178
      // Predicated region
      $region25: #{tpu_custom_call.1} parent=5 // pred_check
        _
      $region26: #{tpu_custom_call.1} parent=5 // pred_check_branch
        %181 = sbr.rel (%p178) target = $region28
      $region27: #{tpu_custom_call.1} parent=5 // pred_region
        %s182 = ssub.s32 %s17, 1
        %s183 = sand.u32 %s44, 1
        %s184 = scalar_lea.sflag [#allocation3], %s183
        %s185 = sand.u32 %s44, 1
        %s186 = smul.addr %s185, 32
        %s187 = scalar_lea.vmem [#allocation2], %s186
        // Predicated region
        $region29: #{tpu_custom_call.1} parent=27 // pred_check
          %p188 = pneg %p57
        $region30: #{tpu_custom_call.1} parent=27 // pred_check_branch
          %190 = sbr.rel (%p188) target = $region32
        $region31: #{tpu_custom_call.1} parent=27 // pred_region
          %191 = dma.done %s184, 512
        $region32: #{tpu_custom_call.1} parent=27 // pred_fallthru
          _
        %s192 = sand.u32 %s70, 1
        %s193 = scalar_lea.sflag [#allocation6], %s192
        %s194 = sand.u32 %s70, 1
        %s195 = smul.addr %s194, 16
        %s196 = scalar_lea.vmem [#allocation5], %s195
        // Predicated region
        $region33: #{tpu_custom_call.1} parent=27 // pred_check
          %p197 = pneg %p83
        $region34: #{tpu_custom_call.1} parent=27 // pred_check_branch
          %199 = sbr.rel (%p197) target = $region36
        $region35: #{tpu_custom_call.1} parent=27 // pred_region
          %200 = dma.done %s193, 256
        $region36: #{tpu_custom_call.1} parent=27 // pred_fallthru
          _
        %s201 = sand.u32 %s44, 1
        %s202 = scalar_lea.sflag [#allocation3], %s201
        %s203 = sand.u32 %s44, 1
        %s204 = smul.addr %s203, 32
        %s205 = scalar_lea.vmem [#allocation2], %s204
        %p206 = pneg %p57
        %p207 = pneg %p54
        %s208 = sand.u32 %s70, 1
        %s209 = scalar_lea.sflag [#allocation6], %s208
        %s210 = sand.u32 %s70, 1
        %s211 = smul.addr %s210, 16
        %s212 = scalar_lea.vmem [#allocation5], %s211
        %p213 = pneg %p83
        %p214 = pneg %p80
        %p215 = pneg %p111
        %p216 = pneg %p108
        %s217 = sand.u32 %s98, 1
        %s218 = scalar_lea.sflag [#allocation4], %s217
        %s219 = sand.u32 %s98, 1
        %s220 = smul.addr %s219, 8
        %s221 = scalar_lea.vmem [#allocation7], %s220
        %s222 = smul.u32 2, %s26
        %s223 = smul.u32 2, %s27
        %s224 = smul.u32 2, %s26
        %v225 = vld [vmem:[%s187 + $0x1] sm:$0xff]
        %v226 = vld [vmem:[%s187 + $0x9] sm:$0x7f]
        %v227 = vld [vmem:[%s187 + $0x11] sm:$0xff]
        %v228 = vld [vmem:[%s187 + $0x19] sm:$0x7f]
        %v229 = vld [vmem:[%s187] sm:$0xff]
        %v230 = vld [vmem:[%s187 + $0x8] sm:$0x7f]
        %v231 = vld [vmem:[%s187 + $0x10] sm:$0xff]
        %v232 = vld [vmem:[%s187 + $0x18] sm:$0x7f]
        %v233 = vsub.f32 %v225, %v229
        %v234 = vsub.f32 %v226, %v230
        %v235 = vsub.f32 %v227, %v231
        %v236 = vsub.f32 %v228, %v232
        %v237 = vmul.f32 %v233, %v233
        %v238 = vmul.f32 %v234, %v234
        %v239 = vmul.f32 %v235, %v235
        %v240 = vmul.f32 %v236, %v236
        %vm241 = vcmask 130048
        %v242 = vsel %vm241, %v237, 0.0
        %vm243 = vcmask 129024
        %v244 = vsel %vm243, %v238, 0.0
        %v245 = vadd.f32 %v242, %v244
        %v246 = vsel %vm241, %v239, 0.0
        %v247 = vadd.f32 %v245, %v246
        %v248 = vsel %vm243, %v240, 0.0
        %v249 = vadd.f32 %v247, %v248
        %250 = vadd.xlane.f32.xlu0 %v249
        %v251 = vpop.xlane.xlu0 %250
        %v252 = vrot.slane %v251, 4
        %v253 = vadd.f32 %v251, %v252
        %v254 = vrot.slane %v253, 2
        %v255 = vadd.f32 %v253, %v254
        %v256 = vrot.slane %v255, 1
        %v257 = vadd.f32 %v255, %v256
        %s258 = vtos %v257
        %v259 = vld [vmem:[%s196] sm:$0xff]
        %v260 = vld [vmem:[%s196 + $0x8] sm:$0xff]
        %v261 = vld [vmem:[%s187 + $0xf] sm:$0x1]
        %v262 = vld [vmem:[%s187 + $0x1f] sm:$0x1]
        %v263 = vsub.f32 %v259, %v261
        %v264 = vsub.f32 %v260, %v262
        %s265 = sadd.s32 %s27, 1
        %p266 = scmp.lt.s32.totalorder %s265, 1
        %s267 = scalar_select %p266, 1, 0
        %s268 = scvt.s32.f32 %s267
        %v269 = vmul.f32 %v263, %v263
        %v270 = vmul.f32 %v264, %v264
        %v273 = vrot.slane %v270, 7
        %vm274 = vcmask 1041409
        %v275 = vsel %vm274, %v273, %v269
        %vm277 = vcmask 123904
        %v278 = vsel %vm277, %v275, 0.0
        %279 = vadd.xlane.f32.xlu0 %v278
        %v280 = vpop.xlane.xlu0 %279
        %v281 = vrot.slane %v280, 4
        %v282 = vadd.f32 %v280, %v281
        %v283 = vrot.slane %v282, 2
        %v284 = vadd.f32 %v282, %v283
        %v285 = vrot.slane %v284, 1
        %v286 = vadd.f32 %v284, %v285
        %s287 = vtos %v286
        %s288 = smul.f32 %s268, %s287
        %s289 = sadd.f32 %s258, %s288
        %v290 = vld [vmem:[%s187 + $0x8] sm:$0xff]
        %v291 = vld [vmem:[%s187 + $0x18] sm:$0xff]
        %296 = vrot.lane.b32.xlu0 %v229, 1
        %v297 = vpop.permute.xlu0 %296
        %298 = vrot.lane.b32.xlu0 %v290, 1
        %v299 = vpop.permute.xlu0 %298
        %300 = vrot.lane.b32.xlu0 %v231, 1
        %v301 = vpop.permute.xlu0 %300
        %302 = vrot.lane.b32.xlu0 %v291, 1
        %v303 = vpop.permute.xlu0 %302
        %v308 = vsub.f32 %v229, %v297
        %v309 = vsub.f32 %v290, %v299
        %v310 = vsub.f32 %v231, %v301
        %v311 = vsub.f32 %v291, %v303
        %v312 = vmul.f32 %v308, %v308
        %v313 = vmul.f32 %v309, %v309
        %v314 = vmul.f32 %v310, %v310
        %v315 = vmul.f32 %v311, %v311
        %320 = vrot.lane.b32.xlu0 %v312, 127
        %v321 = vpop.permute.xlu0 %320
        %322 = vrot.lane.b32.xlu0 %v313, 127
        %v323 = vpop.permute.xlu0 %322
        %324 = vrot.lane.b32.xlu0 %v314, 127
        %v325 = vpop.permute.xlu0 %324
        %326 = vrot.lane.b32.xlu0 %v315, 127
        %v327 = vpop.permute.xlu0 %326
        %vm332 = vcmask 121856
        %v333 = vsel %vm332, %v321, 0.0
        %v334 = vsel %vm332, %v323, 0.0
        %v335 = vadd.f32 %v333, %v334
        %v336 = vsel %vm332, %v325, 0.0
        %v337 = vadd.f32 %v335, %v336
        %v338 = vsel %vm332, %v327, 0.0
        %v339 = vadd.f32 %v337, %v338
        %340 = vadd.xlane.f32.xlu0 %v339
        %v341 = vpop.xlane.xlu0 %340
        %v342 = vrot.slane %v341, 4
        %v343 = vadd.f32 %v341, %v342
        %v344 = vrot.slane %v343, 2
        %v345 = vadd.f32 %v343, %v344
        %v346 = vrot.slane %v345, 1
        %v347 = vadd.f32 %v345, %v346
        %s348 = vtos %v347
        %s349 = smul.f32 %s289, 0.0010416667
        %s350 = smul.f32 %s348, 0.0010416667
        %s351 = sadd.f32 %s349, %s350
        %v352 = vstv %s351
        %353 = vst [vmem:[%s221] sm:$0xff] %v352
        %s354 = sand.u32 %s98, 1
        %s355 = scalar_lea.sflag [#allocation4], %s354
        %s356 = sand.u32 %s98, 1
        %s357 = smul.addr %s356, 8
        %s358 = scalar_lea.vmem [#allocation7], %s357
        // Predicated region
        $region37: #{tpu_custom_call.1} parent=27 // pred_check
          %p359 = pneg %p108
        $region38: #{tpu_custom_call.1} parent=27 // pred_check_branch
          %361 = sbr.rel (%p359) target = $region40
        $region39: #{tpu_custom_call.1} parent=27 // pred_region
          %s363 = ssub.s32 128, 128
          %364 = vsyncadd %s355, %s363
          %s365 = sadd.s32 %s27, %s26
          %s366 = smul.addr %s365, 128
          %s367 = scalar_lea.hbm %s2, %s366
          %s369 = sshll.u32 %s358, 4
          %s370 = int_to_ptr.vmem [resolvable:$true] %s369
          %372 = dma.vmem_to_hbm [thread:$0]  %s370, 128, %s367, %s355
        $region40: #{tpu_custom_call.1} parent=27 // pred_fallthru
          _
      $region28: #{tpu_custom_call.1} parent=5 // pred_fallthru
        _
      %p373 = scmp.le.s32.totalorder 2, %s17
      // Predicated region
      $region41: #{tpu_custom_call.1} parent=5 // pred_check
        %p374 = pneg %p373
      $region42: #{tpu_custom_call.1} parent=5 // pred_check_branch
        %376 = sbr.rel (%p374) target = $region44
      $region43: #{tpu_custom_call.1} parent=5 // pred_region
        %s377 = ssub.s32 %s17, 2
        // Predicated region
        $region45: #{tpu_custom_call.1} parent=43 // pred_check
          %p378 = pneg %p114
        $region46: #{tpu_custom_call.1} parent=43 // pred_check_branch
          %380 = sbr.rel (%p378) target = $region48
        $region47: #{tpu_custom_call.1} parent=43 // pred_region
          %s381 = sand.u32 %s99, 1
          %s382 = scalar_lea.sflag [#allocation4], %s381
          %s383 = sand.u32 %s99, 1
          %s384 = smul.addr %s383, 8
          %s385 = scalar_lea.vmem [#allocation7], %s384
          %386 = dma.done %s382, 128
        $region48: #{tpu_custom_call.1} parent=43 // pred_fallthru
          _
      $region44: #{tpu_custom_call.1} parent=5 // pred_fallthru
        _
    $region6: #{tpu_custom_call.1} parent=1 // loop_footer
      %s21 = sadd.s32 1, %s17
    $region7: #{tpu_custom_call.1} parent=1 // loop_footer_branch
      %16 = sbr.rel target = $region3
    $region8: #{tpu_custom_call.1} parent=1 // loop_exit
      _
    %387 = vsyncpa [#allocation3], 1
    %s388 = scalar_lea.sflag [#allocation3], 1
    %389 = vsyncpa %s388, 1
    %390 = vsyncpa [#allocation6], 1
    %s391 = scalar_lea.sflag [#allocation6], 1
    %392 = vsyncpa %s391, 1
    %393 = vsyncpa [#allocation4], 1
    %s394 = scalar_lea.sflag [#allocation4], 1
    %395 = vsyncpa %s394, 1

</llo_original>
